<compile_context>
chip_gen: v6e
topology: v6e:2x2x1
jax: 0.10.0
libtpu: 0.0.40
codegen_flags: <defaults>
</compile_context>

<pallas_src>
import math

import jax
import jax.numpy as jnp
from jax.experimental import pallas as pl
from jax.experimental.pallas import tpu as pltpu


def _scaled_pe_kernel(alpha_ref, x_ref, pe_ref, o_ref):
    # alpha_ref: SMEM (1,) f32
    # x_ref:  (tb, tn) VMEM tile of the flattened (B, T*D) input
    # pe_ref: (1,  tn) VMEM tile of the flattened positional table
    # o_ref:  (tb, tn) VMEM output tile
    alpha = alpha_ref[0]
    x = x_ref[...].astype(jnp.float32)
    pe = pe_ref[...].astype(jnp.float32)        # broadcasts over the batch rows
    o_ref[...] = (x + alpha * pe).astype(o_ref.dtype)


def make_pe_table(d_model: int, max_len: int) -> jnp.ndarray:
    """Sinusoidal positional encoding table, shape (1, max_len, d_model), f32."""
    position = jnp.arange(0, max_len, dtype=jnp.float32)[:, None]          # (L, 1)
    div_term = jnp.exp(
        jnp.arange(0, d_model, 2, dtype=jnp.float32)
        * -(math.log(10000.0) / d_model)
    )                                                                       # (D/2,)
    angles = position * div_term                                            # (L, D/2)
    pe = jnp.zeros((max_len, d_model), dtype=jnp.float32)
    pe = pe.at[:, 0::2].set(jnp.sin(angles))
    pe = pe.at[:, 1::2].set(jnp.cos(angles))
    return pe[None, :, :]                                                   # (1, L, D)


def _pick_lane_tile(dim: int, quantum: int, max_tile: int) -> int:
    """Largest multiple of `quantum` dividing `dim`, capped at `max_tile`.

    Falls back to the full `dim`, which is always a legal block extent."""
    if dim <= max_tile:
        return dim
    if dim % quantum != 0:
        # TODO(synk): pad the flattened lane axis to a multiple of 128 instead
        # of falling back to one full-width block per batch tile.
        return dim
    t = min(dim, max_tile)
    t -= t % quantum
    while t >= quantum:
        if dim % t == 0:
            return t
        t -= quantum
    return dim


def legacy_scaled_positional_encoding(x: jnp.ndarray,
                                      pe: jnp.ndarray,
                                      alpha: jnp.ndarray) -> jnp.ndarray:
    """out = x + alpha * pe[:, :T, :]   (dropout is identity at inference)."""
    B, T, D = x.shape
    TD = T * D

    # Flatten to 2-D so the last (lane) block dim is a large multiple of 128.
    x2 = x.reshape(B, TD)
    pe2 = pe[:, :T, :].reshape(1, TD).astype(x.dtype)   # narrower pe => fewer HBM bytes
    alpha_arr = jnp.reshape(alpha, (1,)).astype(jnp.float32)

    itemsize = jnp.dtype(x.dtype).itemsize
    # Batch (sublane) tile: multiple of 8 when possible, else the full batch.
    tb = min(B, 8) if B % 8 == 0 else B
    # Lane tile: multiple of 128 dividing T*D, sized for ~2 MiB x/out tiles.
    target_tile_bytes = 2 * 1024 * 1024
    max_lane = max(128, target_tile_bytes // (tb * itemsize))
    tn = _pick_lane_tile(TD, 128, max_lane)

    # Batch axis innermost (fastest varying) -> pe tile is reused across batch.
    grid = (TD // tn, B // tb)

    out2 = pl.pallas_call(
        _scaled_pe_kernel,
        out_shape=jax.ShapeDtypeStruct((B, TD), x.dtype),
        grid_spec=pltpu.PrefetchScalarGridSpec(
            num_scalar_prefetch=0,
            grid=grid,
            in_specs=[
                pl.BlockSpec(memory_space=pltpu.SMEM),                 # alpha
                pl.BlockSpec((tb, tn), lambda n, b: (b, n)),           # x
                pl.BlockSpec((1, tn), lambda n, b: (0, n)),            # pe (batch-bcast)
            ],
            out_specs=pl.BlockSpec((tb, tn), lambda n, b: (b, n)),
        ),
        compiler_params=pltpu.CompilerParams(
            dimension_semantics=("parallel", "parallel"),
            vmem_limit_bytes=32 * 1024 * 1024,
        ),
    )(alpha_arr, x2, pe2)

    return out2.reshape(B, T, D)


if __name__ == "__main__":
    d_model = 32
    max_len = 5000
    B, T = 2, 8        # small demo shapes; benchmark with production shapes.
    # TODO(synk): training-mode dropout (dropout_rate) is not implemented;
    # this is the inference path where dropout is the identity.

    key = jax.random.PRNGKey(0)
    x = jax.random.normal(key, (B, T, d_model), dtype=jnp.float32)

    # Parameter init, deterministic (matches nn.Parameter(torch.tensor(1.0))).
    alpha = jnp.float32(1.0)
    pe = make_pe_table(d_model, max_len)

    out = legacy_scaled_positional_encoding(x, pe, alpha)
    out = jax.block_until_ready(out)

    # Pure-JAX reference check.
    ref = x + alpha * pe[:, :T, :]
    assert out.shape == (B, T, d_model)
    assert jnp.allclose(out, ref, atol=1e-6), "mismatch vs reference"

    print("KERNEL_OK")
</pallas_src>

<mosaic_0001>
module attributes {stable_mosaic.version = 11 : i64} {
  func.func @_scaled_pe_kernel(%arg0: i32, %arg1: i32, %arg2: memref<1xf32, #tpu.memory_space<smem>>, %arg3: memref<2x256xf32, #tpu.memory_space<vmem>>, %arg4: memref<1x256xf32, #tpu.memory_space<vmem>>, %arg5: memref<2x256xf32, #tpu.memory_space<vmem>>) attributes {dimension_semantics = [#tpu.dimension_semantics<parallel>, #tpu.dimension_semantics<parallel>], iteration_bounds = array<i64: 1, 1>, scalar_prefetch = 0 : i64, scratch_operands = 0 : i64, tpu.core_type = #tpu.core_type<tc>, window_params = [{transform_indices = @transform_0, window_bounds = array<i64: 1>}, {transform_indices = @transform_1, window_bounds = array<i64: 2, 256>}, {transform_indices = @transform_2, window_bounds = array<i64: 1, 256>}, {transform_indices = @transform_3, window_bounds = array<i64: 2, 256>}]} {
    %c0 = arith.constant 0 : index
    %0 = memref.load %arg2[%c0] : memref<1xf32, #tpu.memory_space<smem>>
    %c0_0 = arith.constant 0 : index
    %c0_1 = arith.constant 0 : index
    %1 = vector.load %arg3[%c0_0, %c0_1] : memref<2x256xf32, #tpu.memory_space<vmem>>, vector<2x256xf32>
    %c0_2 = arith.constant 0 : index
    %c0_3 = arith.constant 0 : index
    %2 = vector.load %arg4[%c0_2, %c0_3] : memref<1x256xf32, #tpu.memory_space<vmem>>, vector<1x256xf32>
    %3 = vector.broadcast %0 : f32 to vector<1x256xf32>
    %4 = arith.mulf %3, %2 : vector<1x256xf32>
    %5 = vector.broadcast %4 : vector<1x256xf32> to vector<2x256xf32>
    %6 = arith.addf %1, %5 : vector<2x256xf32>
    %c0_4 = arith.constant 0 : index
    %c0_5 = arith.constant 0 : index
    %7 = vector.load %arg5[%c0_4, %c0_5] : memref<2x256xf32, #tpu.memory_space<vmem>>, vector<2x256xf32>
    tpu.vector_store %arg5[%c0_4, %c0_5], %6 {strides = array<i32>} : memref<2x256xf32, #tpu.memory_space<vmem>>, vector<2x256xf32>,
    return
  }
  func.func @transform_0(%arg0: i32, %arg1: i32) -> i32 {
    %c0_i32 = arith.constant 0 : i32
    %c0_i32_0 = arith.constant 0 : i32
    return %c0_i32 : i32
  }
  func.func @transform_1(%arg0: i32, %arg1: i32) -> (i32, i32) {
    %c0_i32 = arith.constant 0 : i32
    return %arg1, %arg0 : i32, i32
  }
  func.func @transform_2(%arg0: i32, %arg1: i32) -> (i32, i32) {
    %c0_i32 = arith.constant 0 : i32
    %c0_i32_0 = arith.constant 0 : i32
    return %c0_i32, %arg0 : i32, i32
  }
  func.func @transform_3(%arg0: i32, %arg1: i32) -> (i32, i32) {
    %c0_i32 = arith.constant 0 : i32
    return %arg1, %arg0 : i32, i32
  }
}

</mosaic_0001>

<llo_original>
// kernel: tpu_custom_call.1
$region0: #{tpu_custom_call.1}
  #allocation0 [shape = 'u32[]', space=smem, size = 0x4, offset = 0x4, fixed_abs, tag = 'smem constant byte address 0x4 - core index']
  #allocation1 [shape = 'u32[144,128]{1,0:T(1,128)}', space=vmem, size = 0x12000, scoped, tag = 'internal scratch']
  #allocation2 [shape = 'f32[1]{0:T(128)S(6)}', space=smem, size = 0x200, scoped, tag = 'scoped memory for tpu_custom_call.1']
  %s0 = inlined_call_operand.<no memory space> [shape: f32[1], index: 0, kind: input, shape index: {}]
  %s1 = inlined_call_operand.hbm [shape: f32[2,256], index: 1, kind: input, shape index: {}]
  %s2 = inlined_call_operand.vmem [shape: f32[1,256], index: 2, kind: input, shape index: {}]
  %s3 = inlined_call_operand.hbm [shape: f32[2,256], index: 3, kind: output, shape index: {}]
  %s4 = sld [smem:[#allocation0]]
  $region26: #{tpu_custom_call.1} parent=0
    _
  %s6 = ssub.s32 1, %s4
  %s7 = scalar_select 0, %s6, %s4
  %8 = sst [smem:[#allocation2]] %s0
  $region1: #{tpu_custom_call.1} parent=0
    #allocation3 [shape = 'u8[2048]{0}', space=vmem, size = 0x800, scoped, tag = 'input window, operand 1, single buffered']
    #allocation4 [shape = 's32[1]{0}', space=sflag, size = 0x4, scoped, tag = 'scoped memory for tpu_custom_call.1']
    #allocation5 [shape = 's32[1]{0}', space=sflag, size = 0x4, scoped, tag = 'scoped memory for tpu_custom_call.1']
    #allocation6 [shape = 'u8[2048]{0}', space=vmem, size = 0x800, scoped, tag = 'output window, operand 0, single buffered']
    %9 = vsyncpa [#allocation4], 0
    %10 = vsyncpa [#allocation5], 0
    // Predicated region
    $region2: #{tpu_custom_call.1} parent=1 // pred_check
      _
    $region3: #{tpu_custom_call.1} parent=1 // pred_check_branch
      %12 = sbr.rel (0) target = $region5
    $region4: #{tpu_custom_call.1} parent=1 // pred_region
      _
    $region5: #{tpu_custom_call.1} parent=1 // pred_fallthru
      _
    // Predicated region
    $region6: #{tpu_custom_call.1} parent=1 // pred_check
      _
    $region7: #{tpu_custom_call.1} parent=1 // pred_check_branch
      %14 = sbr.rel (0) target = $region9
    $region8: #{tpu_custom_call.1} parent=1 // pred_region
      %s16 = ssub.s32 64, 64
      %17 = vsyncadd [#allocation4], %s16
      %s19 = sshll.u32 [#allocation3], 4
      %s20 = int_to_ptr.vmem [resolvable:$true] %s19
      %22 = dma.hbm_to_vmem [thread:$0]  %s1, 64, %s20, [#allocation4]
    $region9: #{tpu_custom_call.1} parent=1 // pred_fallthru
      _
    // Predicated region
    $region10: #{tpu_custom_call.1} parent=1 // pred_check
      _
    $region11: #{tpu_custom_call.1} parent=1 // pred_check_branch
      %24 = sbr.rel (0) target = $region13
    $region12: #{tpu_custom_call.1} parent=1 // pred_region
      _
    $region13: #{tpu_custom_call.1} parent=1 // pred_fallthru
      _
    // Predicated region
    $region14: #{tpu_custom_call.1} parent=1 // pred_check
      _
    $region15: #{tpu_custom_call.1} parent=1 // pred_check_branch
      %26 = sbr.rel (0) target = $region17
    $region16: #{tpu_custom_call.1} parent=1 // pred_region
      %27 = dma.done [#allocation4], 64
    $region17: #{tpu_custom_call.1} parent=1 // pred_fallthru
      _
    %s28 = sld [smem:[#allocation2]]
    %v29 = vld [vmem:[#allocation3] sm:$0xf]
    %v30 = vld [vmem:[%s2] sm:$0x3]
    %v31 = vstv %s28
    %v32 = vmul.f32 %v31, %v30
    %v34 = vlaneseq
    %v35 = vshrl.u32 %v34, 7
    %v36 = vsub.s32 0, %v35
    %v37 = vrot.slane %v32, %v36
    %v38 = vlaneseq
    %v39 = vshrl.u32 %v38, 7
    %v40 = vsub.s32 1, %v39
    %v41 = vrot.slane %v32, %v40
    %v42 = vcombine.low %v37, %v41
    %v44 = vunpack.c.l.s4 1983009808
    %v45 = vunpack.c.0.s8 %v44
    %v46 = vlaneseq
    %v47 = vshrl.u32 %v46, 7
    %v48 = vsub.s32 %v45, %v47
    %v49 = vrot.slane %v42, %v48
    %v51 = vadd.f32 %v29, %v49
    %52 = vst [vmem:[#allocation6] sm:$0xf] %v51
    // Predicated region
    $region18: #{tpu_custom_call.1} parent=1 // pred_check
      _
    $region19: #{tpu_custom_call.1} parent=1 // pred_check_branch
      %54 = sbr.rel (0) target = $region21
    $region20: #{tpu_custom_call.1} parent=1 // pred_region
      %s56 = ssub.s32 64, 64
      %57 = vsyncadd [#allocation5], %s56
      %s59 = sshll.u32 [#allocation6], 4
      %s60 = int_to_ptr.vmem [resolvable:$true] %s59
      %62 = dma.vmem_to_hbm [thread:$0]  %s60, 64, %s3, [#allocation5]
    $region21: #{tpu_custom_call.1} parent=1 // pred_fallthru
      _
    // Predicated region
    $region22: #{tpu_custom_call.1} parent=1 // pred_check
      _
    $region23: #{tpu_custom_call.1} parent=1 // pred_check_branch
      %64 = sbr.rel (0) target = $region25
    $region24: #{tpu_custom_call.1} parent=1 // pred_region
      %65 = dma.done [#allocation5], 64
    $region25: #{tpu_custom_call.1} parent=1 // pred_fallthru
      _
    %66 = vsyncpa [#allocation4], 1
    %67 = vsyncpa [#allocation5], 1

</llo_original>
